<compile_context>
chip_gen: v5e
topology: v5e:2x2
jax: 0.10.0
libtpu: 0.0.40
codegen_flags: <defaults>
</compile_context>

<pallas_src>
import jax
import jax.numpy as jnp
from jax.experimental import pallas as pl
from jax.experimental.pallas import tpu as pltpu


def _poly(x):
    # FHE-friendly polynomial activation 0.5*x + 0.25*x^2, factored to save a mul.
    return x * (0.5 + 0.25 * x)


def _round_up(x, m):
    return (x + m - 1) // m * m


def _mlp_kernel(x_ref, w1_ref, b1_ref, w2_ref, b2_ref, w3_ref, b3_ref, o_ref):
    # One batch tile per grid step; all three matmuls + activations fused.
    # x / w* arrive already in the compute dtype (pre-cast in the wrapper);
    # accumulation, biases and the polynomial are f32.
    h1 = jnp.dot(x_ref[...], w1_ref[...],
                 preferred_element_type=jnp.float32) + b1_ref[...]
    h1 = _poly(h1)

    h2 = jnp.dot(h1.astype(w2_ref.dtype), w2_ref[...],
                 preferred_element_type=jnp.float32) + b2_ref[...]
    h2 = _poly(h2)

    out = jnp.dot(h2.astype(w3_ref.dtype), w3_ref[...],
                  preferred_element_type=jnp.float32) + b3_ref[...]
    o_ref[...] = out.astype(o_ref.dtype)


def fhe_mlp_forward(x, w1, b1, w2, b2, w3, b3, *,
                    block_batch=512,
                    compute_dtype=jnp.bfloat16,
                    out_dtype=jnp.bfloat16):
    """Forward pass.

    x : (B, input_dim)
    w1: (input_dim, 256), b1: (1, 256)       # weights stored (in, out)
    w2: (256, 128),       b2: (1, 128)
    w3: (128, num_classes), b3: (1, num_classes)
    Returns (B, num_classes) logits in `out_dtype`.
    """
    B, in_dim = x.shape
    H1 = w1.shape[1]            # 256
    H2 = w2.shape[1]            # 128
    num_classes = w3.shape[1]

    # Lane-align only the output N dim (lane-dense unmasked store). x / w1 are
    # NOT padded in K: the x block uses the full input_dim as its last dim.
    N_pad = _round_up(max(num_classes, 128), 128)

    # Batch tile: multiple of 16 (bf16 sublane packing), capped so the grid
    # keeps several steps (>= 2 per TensorCore on v7x; DMA/compute overlap).
    TB = min(_round_up(block_batch, 16),
             max(16, _round_up(pl.cdiv(B, 4), 16)))
    grid = (pl.cdiv(B, TB),)

    # Pre-cast matmul operands once, outside the kernel (halves x streaming
    # bytes and weight DMA/VMEM; no per-step in-kernel casts).
    x_c = x.astype(compute_dtype)
    w1_c = w1.astype(compute_dtype)
    w2_c = w2.astype(compute_dtype)
    w3_c = jnp.pad(w3, ((0, 0), (0, N_pad - num_classes))).astype(compute_dtype)
    b1_c = b1.astype(jnp.float32)
    b2_c = b2.astype(jnp.float32)
    b3_c = jnp.pad(b3, ((0, 0), (0, N_pad - num_classes))).astype(jnp.float32)

    itemsize = jnp.dtype(compute_dtype).itemsize
    out_itemsize = jnp.dtype(out_dtype).itemsize
    flops = 2 * B * (in_dim * H1 + H1 * H2 + H2 * N_pad)
    bytes_accessed = (
        x_c.size * itemsize + B * N_pad * out_itemsize
        + (w1_c.size + w2_c.size + w3_c.size) * itemsize
        + (b1_c.size + b2_c.size + b3_c.size) * 4)

    def run(single_buffer_weights):
        def const_spec(shape):
            # Constant index_map -> fetched once, VMEM-resident across steps.
            if single_buffer_weights:
                return pl.BlockSpec(shape, lambda i: (0, 0),
                                    pipeline_mode=pl.Buffered(1))
            return pl.BlockSpec(shape, lambda i: (0, 0))

        return pl.pallas_call(
            _mlp_kernel,
            out_shape=jax.ShapeDtypeStruct((B, N_pad), out_dtype),
            grid=grid,
            in_specs=[
                pl.BlockSpec((TB, in_dim), lambda i: (i, 0)),  # x: streamed
                const_spec((in_dim, H1)),                      # w1 (resident)
                const_spec((1, H1)),                           # b1 (f32)
                const_spec((H1, H2)),                          # w2
                const_spec((1, H2)),                           # b2 (f32)
                const_spec((H2, N_pad)),                       # w3 (lane-padded)
                const_spec((1, N_pad)),                        # b3 (lane-padded)
            ],
            out_specs=pl.BlockSpec((TB, N_pad), lambda i: (i, 0)),
            compiler_params=pltpu.CompilerParams(
                dimension_semantics=("parallel",),      # 2-TC sharding on v7x
                vmem_limit_bytes=32 * 1024 * 1024,      # > v5e default, < v7x cap
            ),
            cost_estimate=pl.CostEstimate(
                flops=flops, transcendentals=0,
                bytes_accessed=bytes_accessed),
        )(x_c, w1_c, b1_c, w2_c, b2_c, w3_c, b3_c)

    try:
        out_full = run(single_buffer_weights=True)
    except Exception:
        # This JAX build rejects pl.Buffered(1) on constant blocks; default
        # double-buffering only costs a small duplicate of the weight VMEM.
        out_full = run(single_buffer_weights=False)

    # Drop the ragged batch tail (if any) and the lane padding of the logits.
    return out_full[:B, :num_classes]


def init_params(key, input_dim, num_classes):
    """Deterministic synthetic parameters (shapes match the nn.Linear layers)."""
    k = jax.random.split(key, 6)

    def linear(kw, kb, fan_in, fan_out):
        bound = 1.0 / jnp.sqrt(fan_in)
        # Stored directly in (in, out) layout for the kernel.
        w = jax.random.uniform(kw, (fan_in, fan_out), jnp.float32, -bound, bound)
        b = jax.random.uniform(kb, (1, fan_out), jnp.float32, -bound, bound)
        return w, b

    w1, b1 = linear(k[0], k[1], input_dim, 256)
    w2, b2 = linear(k[2], k[3], 256, 128)
    w3, b3 = linear(k[4], k[5], 128, num_classes)
    return w1, b1, w2, b2, w3, b3


def reference_forward(x, w1, b1, w2, b2, w3, b3, compute_dtype=jnp.float32):
    """Plain-JAX reference with the same precision policy as the kernel."""
    cd = compute_dtype
    h1 = _poly(jnp.dot(x.astype(cd), w1.astype(cd),
                       preferred_element_type=jnp.float32) + b1)
    h2 = _poly(jnp.dot(h1.astype(cd), w2.astype(cd),
                       preferred_element_type=jnp.float32) + b2)
    return jnp.dot(h2.astype(cd), w3.astype(cd),
                   preferred_element_type=jnp.float32) + b3


if __name__ == "__main__":
    batch = 8
    input_dim = 32
    num_classes = 10

    key = jax.random.PRNGKey(0)
    kx, kp = jax.random.split(key)
    x = jax.random.normal(kx, (batch, input_dim), jnp.float32)
    params = init_params(kp, input_dim, num_classes)

    # Exactness check: f32 compute + f32 logits (validates the unpadded-K /
    # ragged-batch-tile handling against the plain-JAX reference).
    out_f32 = fhe_mlp_forward(x, *params,
                              compute_dtype=jnp.float32, out_dtype=jnp.float32)
    out_f32 = jax.block_until_ready(out_f32)
    ref_f32 = reference_forward(x, *params, compute_dtype=jnp.float32)
    assert out_f32.shape == (batch, num_classes)
    assert jnp.allclose(out_f32, ref_f32, atol=1e-4, rtol=1e-4), \
        "f32 path mismatch vs JAX reference"

    # Default perf path: bf16 operands, f32 accumulation/bias/poly, bf16 logits.
    out_bf16 = fhe_mlp_forward(x, *params)
    out_bf16 = jax.block_until_ready(out_bf16)
    ref_bf16 = reference_forward(x, *params, compute_dtype=jnp.bfloat16)
    assert out_bf16.shape == (batch, num_classes)
    assert out_bf16.dtype == jnp.bfloat16
    assert jnp.allclose(out_bf16.astype(jnp.float32), ref_bf16,
                        atol=2e-2, rtol=2e-2), \
        "bf16 path mismatch vs bf16 JAX reference"

    print("KERNEL_OK")
</pallas_src>

<mosaic_0001>
module attributes {stable_mosaic.version = 11 : i64} {
  func.func @_mlp_kernel(%arg0: i32, %arg1: memref<16x32xf32, #tpu.memory_space<vmem>>, %arg2: memref<32x256xf32, #tpu.memory_space<vmem>>, %arg3: memref<1x256xf32, #tpu.memory_space<vmem>>, %arg4: memref<256x128xf32, #tpu.memory_space<vmem>>, %arg5: memref<1x128xf32, #tpu.memory_space<vmem>>, %arg6: memref<128x128xf32, #tpu.memory_space<vmem>>, %arg7: memref<1x128xf32, #tpu.memory_space<vmem>>, %arg8: memref<16x128xf32, #tpu.memory_space<vmem>>) attributes {dimension_semantics = [#tpu.dimension_semantics<parallel>], iteration_bounds = array<i64: 1>, scalar_prefetch = 0 : i64, scratch_operands = 0 : i64, tpu.core_type = #tpu.core_type<tc>, window_params = [{transform_indices = @transform_0, window_bounds = array<i64: 16, 32>}, {pipeline_mode = #tpu.pipeline_mode<synchronous>, transform_indices = @transform_1, window_bounds = array<i64: 32, 256>}, {pipeline_mode = #tpu.pipeline_mode<synchronous>, transform_indices = @transform_2, window_bounds = array<i64: 1, 256>}, {pipeline_mode = #tpu.pipeline_mode<synchronous>, transform_indices = @transform_3, window_bounds = array<i64: 256, 128>}, {pipeline_mode = #tpu.pipeline_mode<synchronous>, transform_indices = @transform_4, window_bounds = array<i64: 1, 128>}, {pipeline_mode = #tpu.pipeline_mode<synchronous>, transform_indices = @transform_5, window_bounds = array<i64: 128, 128>}, {pipeline_mode = #tpu.pipeline_mode<synchronous>, transform_indices = @transform_6, window_bounds = array<i64: 1, 128>}, {transform_indices = @transform_7, window_bounds = array<i64: 16, 128>}]} {
    %c0 = arith.constant 0 : index
    %c0_0 = arith.constant 0 : index
    %0 = vector.load %arg1[%c0, %c0_0] : memref<16x32xf32, #tpu.memory_space<vmem>>, vector<16x32xf32>
    %c0_1 = arith.constant 0 : index
    %c0_2 = arith.constant 0 : index
    %1 = vector.load %arg2[%c0_1, %c0_2] : memref<32x256xf32, #tpu.memory_space<vmem>>, vector<32x256xf32>
    %cst = arith.constant dense<0.000000e+00> : vector<16x256xf32>
    %2 = tpu.matmul %0, %1, %cst {dimension_numbers = #tpu.dot_dimension_numbers<[1], [0], [0], [1], [0, 0, 1, 1], [], []>} : vector<16x32xf32>, vector<32x256xf32>, vector<16x256xf32> -> vector<16x256xf32>
    %c0_3 = arith.constant 0 : index
    %c0_4 = arith.constant 0 : index
    %3 = vector.load %arg3[%c0_3, %c0_4] : memref<1x256xf32, #tpu.memory_space<vmem>>, vector<1x256xf32>
    %4 = vector.broadcast %3 : vector<1x256xf32> to vector<16x256xf32>
    %5 = arith.addf %2, %4 : vector<16x256xf32>
    %cst_5 = arith.constant 2.500000e-01 : f32
    %6 = vector.broadcast %cst_5 : f32 to vector<16x256xf32>
    %7 = arith.mulf %6, %5 : vector<16x256xf32>
    %cst_6 = arith.constant 5.000000e-01 : f32
    %8 = vector.broadcast %cst_6 : f32 to vector<16x256xf32>
    %9 = arith.addf %8, %7 : vector<16x256xf32>
    %10 = arith.mulf %5, %9 : vector<16x256xf32>
    %c0_7 = arith.constant 0 : index
    %c0_8 = arith.constant 0 : index
    %11 = vector.load %arg4[%c0_7, %c0_8] : memref<256x128xf32, #tpu.memory_space<vmem>>, vector<256x128xf32>
    %cst_9 = arith.constant dense<0.000000e+00> : vector<16x128xf32>
    %12 = tpu.matmul %10, %11, %cst_9 {dimension_numbers = #tpu.dot_dimension_numbers<[1], [0], [0], [1], [0, 0, 1, 1], [], []>} : vector<16x256xf32>, vector<256x128xf32>, vector<16x128xf32> -> vector<16x128xf32>
    %c0_10 = arith.constant 0 : index
    %c0_11 = arith.constant 0 : index
    %13 = vector.load %arg5[%c0_10, %c0_11] : memref<1x128xf32, #tpu.memory_space<vmem>>, vector<1x128xf32>
    %14 = vector.broadcast %13 : vector<1x128xf32> to vector<16x128xf32>
    %15 = arith.addf %12, %14 : vector<16x128xf32>
    %cst_12 = arith.constant 2.500000e-01 : f32
    %16 = vector.broadcast %cst_12 : f32 to vector<16x128xf32>
    %17 = arith.mulf %16, %15 : vector<16x128xf32>
    %cst_13 = arith.constant 5.000000e-01 : f32
    %18 = vector.broadcast %cst_13 : f32 to vector<16x128xf32>
    %19 = arith.addf %18, %17 : vector<16x128xf32>
    %20 = arith.mulf %15, %19 : vector<16x128xf32>
    %c0_14 = arith.constant 0 : index
    %c0_15 = arith.constant 0 : index
    %21 = vector.load %arg6[%c0_14, %c0_15] : memref<128x128xf32, #tpu.memory_space<vmem>>, vector<128x128xf32>
    %cst_16 = arith.constant dense<0.000000e+00> : vector<16x128xf32>
    %22 = tpu.matmul %20, %21, %cst_16 {dimension_numbers = #tpu.dot_dimension_numbers<[1], [0], [0], [1], [0, 0, 1, 1], [], []>} : vector<16x128xf32>, vector<128x128xf32>, vector<16x128xf32> -> vector<16x128xf32>
    %c0_17 = arith.constant 0 : index
    %c0_18 = arith.constant 0 : index
    %23 = vector.load %arg7[%c0_17, %c0_18] : memref<1x128xf32, #tpu.memory_space<vmem>>, vector<1x128xf32>
    %24 = vector.broadcast %23 : vector<1x128xf32> to vector<16x128xf32>
    %25 = arith.addf %22, %24 : vector<16x128xf32>
    %c0_19 = arith.constant 0 : index
    %c0_20 = arith.constant 0 : index
    %26 = vector.load %arg8[%c0_19, %c0_20] : memref<16x128xf32, #tpu.memory_space<vmem>>, vector<16x128xf32>
    tpu.vector_store %arg8[%c0_19, %c0_20], %25 {strides = array<i32>} : memref<16x128xf32, #tpu.memory_space<vmem>>, vector<16x128xf32>,
    return
  }
  func.func @transform_0(%arg0: i32) -> (i32, i32) {
    %c0_i32 = arith.constant 0 : i32
    %c0_i32_0 = arith.constant 0 : i32
    return %arg0, %c0_i32 : i32, i32
  }
  func.func @transform_1(%arg0: i32) -> (i32, i32) {
    %c0_i32 = arith.constant 0 : i32
    %c0_i32_0 = arith.constant 0 : i32
    %c0_i32_1 = arith.constant 0 : i32
    return %c0_i32, %c0_i32_0 : i32, i32
  }
  func.func @transform_2(%arg0: i32) -> (i32, i32) {
    %c0_i32 = arith.constant 0 : i32
    %c0_i32_0 = arith.constant 0 : i32
    %c0_i32_1 = arith.constant 0 : i32
    return %c0_i32, %c0_i32_0 : i32, i32
  }
  func.func @transform_3(%arg0: i32) -> (i32, i32) {
    %c0_i32 = arith.constant 0 : i32
    %c0_i32_0 = arith.constant 0 : i32
    %c0_i32_1 = arith.constant 0 : i32
    return %c0_i32, %c0_i32_0 : i32, i32
  }
  func.func @transform_4(%arg0: i32) -> (i32, i32) {
    %c0_i32 = arith.constant 0 : i32
    %c0_i32_0 = arith.constant 0 : i32
    %c0_i32_1 = arith.constant 0 : i32
    return %c0_i32, %c0_i32_0 : i32, i32
  }
  func.func @transform_5(%arg0: i32) -> (i32, i32) {
    %c0_i32 = arith.constant 0 : i32
    %c0_i32_0 = arith.constant 0 : i32
    %c0_i32_1 = arith.constant 0 : i32
    return %c0_i32, %c0_i32_0 : i32, i32
  }
  func.func @transform_6(%arg0: i32) -> (i32, i32) {
    %c0_i32 = arith.constant 0 : i32
    %c0_i32_0 = arith.constant 0 : i32
    %c0_i32_1 = arith.constant 0 : i32
    return %c0_i32, %c0_i32_0 : i32, i32
  }
  func.func @transform_7(%arg0: i32) -> (i32, i32) {
    %c0_i32 = arith.constant 0 : i32
    %c0_i32_0 = arith.constant 0 : i32
    return %arg0, %c0_i32 : i32, i32
  }
}

module attributes {stable_mosaic.version = 11 : i64} {
  func.func @_mlp_kernel(%arg0: i32, %arg1: memref<16x32xf32, #tpu.memory_space<vmem>>, %arg2: memref<32x256xf32, #tpu.memory_space<vmem>>, %arg3: memref<1x256xf32, #tpu.memory_space<vmem>>, %arg4: memref<256x128xf32, #tpu.memory_space<vmem>>, %arg5: memref<1x128xf32, #tpu.memory_space<vmem>>, %arg6: memref<128x128xf32, #tpu.memory_space<vmem>>, %arg7: memref<1x128xf32, #tpu.memory_space<vmem>>, %arg8: memref<16x128xf32, #tpu.memory_space<vmem>>) attributes {dimension_semantics = [#tpu.dimension_semantics<parallel>], iteration_bounds = array<i64: 1>, scalar_prefetch = 0 : i64, scratch_operands = 0 : i64, tpu.core_type = #tpu.core_type<tc>, window_params = [{transform_indices = @transform_0, window_bounds = array<i64: 16, 32>}, {pipeline_mode = #tpu.pipeline_mode<synchronous>, transform_indices = @transform_1, window_bounds = array<i64: 32, 256>}, {pipeline_mode = #tpu.pipeline_mode<synchronous>, transform_indices = @transform_2, window_bounds = array<i64: 1, 256>}, {pipeline_mode = #tpu.pipeline_mode<synchronous>, transform_indices = @transform_3, window_bounds = array<i64: 256, 128>}, {pipeline_mode = #tpu.pipeline_mode<synchronous>, transform_indices = @transform_4, window_bounds = array<i64: 1, 128>}, {pipeline_mode = #tpu.pipeline_mode<synchronous>, transform_indices = @transform_5, window_bounds = array<i64: 128, 128>}, {pipeline_mode = #tpu.pipeline_mode<synchronous>, transform_indices = @transform_6, window_bounds = array<i64: 1, 128>}, {transform_indices = @transform_7, window_bounds = array<i64: 16, 128>}]} {
    %c0 = arith.constant 0 : index
    %c0_0 = arith.constant 0 : index
    %0 = vector.load %arg1[%c0, %c0_0] : memref<16x32xf32, #tpu.memory_space<vmem>>, vector<16x32xf32>
    %c0_1 = arith.constant 0 : index
    %c0_2 = arith.constant 0 : index
    %1 = vector.load %arg2[%c0_1, %c0_2] : memref<32x256xf32, #tpu.memory_space<vmem>>, vector<32x256xf32>
    %cst = arith.constant dense<0.000000e+00> : vector<16x256xf32>
    %2 = tpu.matmul %0, %1, %cst {dimension_numbers = #tpu.dot_dimension_numbers<[1], [0], [0], [1], [0, 0, 1, 1], [], []>} : vector<16x32xf32>, vector<32x256xf32>, vector<16x256xf32> -> vector<16x256xf32>
    %c0_3 = arith.constant 0 : index
    %c0_4 = arith.constant 0 : index
    %3 = vector.load %arg3[%c0_3, %c0_4] : memref<1x256xf32, #tpu.memory_space<vmem>>, vector<1x256xf32>
    %4 = vector.broadcast %3 : vector<1x256xf32> to vector<16x256xf32>
    %5 = arith.addf %2, %4 : vector<16x256xf32>
    %cst_5 = arith.constant 2.500000e-01 : f32
    %6 = vector.broadcast %cst_5 : f32 to vector<16x256xf32>
    %7 = arith.mulf %6, %5 : vector<16x256xf32>
    %cst_6 = arith.constant 5.000000e-01 : f32
    %8 = vector.broadcast %cst_6 : f32 to vector<16x256xf32>
    %9 = arith.addf %8, %7 : vector<16x256xf32>
    %10 = arith.mulf %5, %9 : vector<16x256xf32>
    %c0_7 = arith.constant 0 : index
    %c0_8 = arith.constant 0 : index
    %11 = vector.load %arg4[%c0_7, %c0_8] : memref<256x128xf32, #tpu.memory_space<vmem>>, vector<256x128xf32>
    %cst_9 = arith.constant dense<0.000000e+00> : vector<16x128xf32>
    %12 = tpu.matmul %10, %11, %cst_9 {dimension_numbers = #tpu.dot_dimension_numbers<[1], [0], [0], [1], [0, 0, 1, 1], [], []>} : vector<16x256xf32>, vector<256x128xf32>, vector<16x128xf32> -> vector<16x128xf32>
    %c0_10 = arith.constant 0 : index
    %c0_11 = arith.constant 0 : index
    %13 = vector.load %arg5[%c0_10, %c0_11] : memref<1x128xf32, #tpu.memory_space<vmem>>, vector<1x128xf32>
    %14 = vector.broadcast %13 : vector<1x128xf32> to vector<16x128xf32>
    %15 = arith.addf %12, %14 : vector<16x128xf32>
    %cst_12 = arith.constant 2.500000e-01 : f32
    %16 = vector.broadcast %cst_12 : f32 to vector<16x128xf32>
    %17 = arith.mulf %16, %15 : vector<16x128xf32>
    %cst_13 = arith.constant 5.000000e-01 : f32
    %18 = vector.broadcast %cst_13 : f32 to vector<16x128xf32>
    %19 = arith.addf %18, %17 : vector<16x128xf32>
    %20 = arith.mulf %15, %19 : vector<16x128xf32>
    %c0_14 = arith.constant 0 : index
    %c0_15 = arith.constant 0 : index
    %21 = vector.load %arg6[%c0_14, %c0_15] : memref<128x128xf32, #tpu.memory_space<vmem>>, vector<128x128xf32>
    %cst_16 = arith.constant dense<0.000000e+00> : vector<16x128xf32>
    %22 = tpu.matmul %20, %21, %cst_16 {dimension_numbers = #tpu.dot_dimension_numbers<[1], [0], [0], [1], [0, 0, 1, 1], [], []>} : vector<16x128xf32>, vector<128x128xf32>, vector<16x128xf32> -> vector<16x128xf32>
    %c0_17 = arith.constant 0 : index
    %c0_18 = arith.constant 0 : index
    %23 = vector.load %arg7[%c0_17, %c0_18] : memref<1x128xf32, #tpu.memory_space<vmem>>, vector<1x128xf32>
    %24 = vector.broadcast %23 : vector<1x128xf32> to vector<16x128xf32>
    %25 = arith.addf %22, %24 : vector<16x128xf32>
    %c0_19 = arith.constant 0 : index
    %c0_20 = arith.constant 0 : index
    %26 = vector.load %arg8[%c0_19, %c0_20] : memref<16x128xf32, #tpu.memory_space<vmem>>, vector<16x128xf32>
    tpu.vector_store %arg8[%c0_19, %c0_20], %25 {strides = array<i32>} : memref<16x128xf32, #tpu.memory_space<vmem>>, vector<16x128xf32>,
    return
  }
  func.func @transform_0(%arg0: i32) -> (i32, i32) {
    %c0_i32 = arith.constant 0 : i32
    %c0_i32_0 = arith.constant 0 : i32
    return %arg0, %c0_i32 : i32, i32
  }
  func.func @transform_1(%arg0: i32) -> (i32, i32) {
    %c0_i32 = arith.constant 0 : i32
    %c0_i32_0 = arith.constant 0 : i32
    %c0_i32_1 = arith.constant 0 : i32
    return %c0_i32, %c0_i32_0 : i32, i32
  }
  func.func @transform_2(%arg0: i32) -> (i32, i32) {
    %c0_i32 = arith.constant 0 : i32
    %c0_i32_0 = arith.constant 0 : i32
    %c0_i32_1 = arith.constant 0 : i32
    return %c0_i32, %c0_i32_0 : i32, i32
  }
  func.func @transform_3(%arg0: i32) -> (i32, i32) {
    %c0_i32 = arith.constant 0 : i32
    %c0_i32_0 = arith.constant 0 : i32
    %c0_i32_1 = arith.constant 0 : i32
    return %c0_i32, %c0_i32_0 : i32, i32
  }
  func.func @transform_4(%arg0: i32) -> (i32, i32) {
    %c0_i32 = arith.constant 0 : i32
    %c0_i32_0 = arith.constant 0 : i32
    %c0_i32_1 = arith.constant 0 : i32
    return %c0_i32, %c0_i32_0 : i32, i32
  }
  func.func @transform_5(%arg0: i32) -> (i32, i32) {
    %c0_i32 = arith.constant 0 : i32
    %c0_i32_0 = arith.constant 0 : i32
    %c0_i32_1 = arith.constant 0 : i32
    return %c0_i32, %c0_i32_0 : i32, i32
  }
  func.func @transform_6(%arg0: i32) -> (i32, i32) {
    %c0_i32 = arith.constant 0 : i32
    %c0_i32_0 = arith.constant 0 : i32
    %c0_i32_1 = arith.constant 0 : i32
    return %c0_i32, %c0_i32_0 : i32, i32
  }
  func.func @transform_7(%arg0: i32) -> (i32, i32) {
    %c0_i32 = arith.constant 0 : i32
    %c0_i32_0 = arith.constant 0 : i32
    return %arg0, %c0_i32 : i32, i32
  }
}

</mosaic_0001>

<llo_original>
// kernel: tpu_custom_call.1
$region0: #{tpu_custom_call.1}
  #allocation0 [shape = 'u32[]', space=smem, size = 0x4, offset = 0x4, fixed_abs, tag = 'smem constant byte address 0x4 - core index']
  #allocation1 [shape = 'u32[72,128]{1,0:T(1,128)}', space=vmem, size = 0x9000, scoped, tag = 'internal scratch']
  %s0 = inlined_call_operand.hbm [shape: f32[8,32], index: 0, kind: input, shape index: {}]
  %s1 = inlined_call_operand.hbm [shape: f32[32,256], index: 1, kind: input, shape index: {}]
  %s2 = inlined_call_operand.hbm [shape: f32[1,256], index: 2, kind: input, shape index: {}]
  %s3 = inlined_call_operand.hbm [shape: f32[256,128], index: 3, kind: input, shape index: {}]
  %s4 = inlined_call_operand.vmem [shape: f32[1,128], index: 4, kind: input, shape index: {}]
  %s5 = inlined_call_operand.hbm [shape: f32[128,128], index: 5, kind: input, shape index: {}]
  %s6 = inlined_call_operand.vmem [shape: f32[1,128], index: 6, kind: input, shape index: {}]
  %s7 = inlined_call_operand.hbm [shape: f32[8,128], index: 7, kind: output, shape index: {}]
  %s8 = sld [smem:[#allocation0]]
  $region58: #{tpu_custom_call.1} parent=0
    _
  %s10 = ssub.s32 1, %s8
  %s11 = scalar_select 0, %s10, %s8
  $region1: #{tpu_custom_call.1} parent=0
    #allocation2 [shape = 'u8[8192]{0}', space=vmem, size = 0x2000, scoped, tag = 'input window, operand 0, single buffered']
    #allocation3 [shape = 's32[1]{0}', space=sflag, size = 0x4, scoped, tag = 'scoped memory for tpu_custom_call.1']
    #allocation4 [shape = 's32[1]{0}', space=sflag, size = 0x4, scoped, tag = 'scoped memory for tpu_custom_call.1']
    #allocation5 [shape = 'u8[32768]{0}', space=vmem, size = 0x8000, scoped, tag = 'input window, operand 1, single buffered']
    #allocation6 [shape = 's32[1]{0}', space=sflag, size = 0x4, scoped, tag = 'scoped memory for tpu_custom_call.1']
    #allocation7 [shape = 'u8[1024]{0}', space=vmem, size = 0x400, scoped, tag = 'input window, operand 2, single buffered']
    #allocation8 [shape = 'u8[131072]{0}', space=vmem, size = 0x20000, scoped, tag = 'input window, operand 3, single buffered']
    #allocation9 [shape = 's32[1]{0}', space=sflag, size = 0x4, scoped, tag = 'scoped memory for tpu_custom_call.1']
    #allocation10 [shape = 'u8[65536]{0}', space=vmem, size = 0x10000, scoped, tag = 'input window, operand 5, single buffered']
    #allocation11 [shape = 'u8[8192]{0}', space=vmem, size = 0x2000, scoped, tag = 'output window, operand 0, single buffered']
    %12 = vsyncpa [#allocation3], 0
    %13 = vsyncpa [#allocation6], 0
    %14 = vsyncpa [#allocation9], 0
    %15 = vsyncpa [#allocation4], 0
    // Predicated region
    $region2: #{tpu_custom_call.1} parent=1 // pred_check
      _
    $region3: #{tpu_custom_call.1} parent=1 // pred_check_branch
      %17 = sbr.rel (0) target = $region5
    $region4: #{tpu_custom_call.1} parent=1 // pred_region
      %19 = vsyncadd [#allocation3], 128
      %s20 = sshll.u32 %s0, 4
      %s21 = int_to_ptr.hbm [resolvable:$true] %s20
      %s22 = sshll.u32 [#allocation2], 4
      %s23 = int_to_ptr.vmem [resolvable:$true] %s22
      %28 = dma.hbm_to_vmem [thread:$0]  %s21, 128, %s23, [#allocation3], 128, 128, 8
    $region5: #{tpu_custom_call.1} parent=1 // pred_fallthru
      _
    // Predicated region
    $region6: #{tpu_custom_call.1} parent=1 // pred_check
      _
    $region7: #{tpu_custom_call.1} parent=1 // pred_check_branch
      %30 = sbr.rel (0) target = $region9
    $region8: #{tpu_custom_call.1} parent=1 // pred_region
      %32 = vsyncadd [#allocation6], 0
      %s33 = sshll.u32 %s1, 4
      %s34 = int_to_ptr.hbm [resolvable:$true] %s33
      %s35 = sshll.u32 [#allocation5], 4
      %s36 = int_to_ptr.vmem [resolvable:$true] %s35
      %41 = dma.hbm_to_vmem [thread:$0]  %s34, 1024, %s36, [#allocation6], 256, 256, 16
    $region9: #{tpu_custom_call.1} parent=1 // pred_fallthru
      _
    // Predicated region
    $region10: #{tpu_custom_call.1} parent=1 // pred_check
      _
    $region11: #{tpu_custom_call.1} parent=1 // pred_check_branch
      %43 = sbr.rel (0) target = $region13
    $region12: #{tpu_custom_call.1} parent=1 // pred_region
      %45 = vsyncadd [#allocation6], 0
      %s47 = sshll.u32 %s2, 4
      %s48 = int_to_ptr.hbm [resolvable:$true] %s47
      %s49 = sshll.u32 [#allocation7], 4
      %s50 = int_to_ptr.vmem [resolvable:$true] %s49
      %52 = dma.hbm_to_vmem [thread:$0]  %s48, 32, %s50, [#allocation6]
    $region13: #{tpu_custom_call.1} parent=1 // pred_fallthru
      _
    // Predicated region
    $region14: #{tpu_custom_call.1} parent=1 // pred_check
      _
    $region15: #{tpu_custom_call.1} parent=1 // pred_check_branch
      %54 = sbr.rel (0) target = $region17
    $region16: #{tpu_custom_call.1} parent=1 // pred_region
      %56 = vsyncadd [#allocation9], 0
      %s57 = sshll.u32 %s3, 4
      %s58 = int_to_ptr.hbm [resolvable:$true] %s57
      %s59 = sshll.u32 [#allocation8], 4
      %s60 = int_to_ptr.vmem [resolvable:$true] %s59
      %65 = dma.hbm_to_vmem [thread:$0]  %s58, 4096, %s60, [#allocation9], 128, 128, 8
    $region17: #{tpu_custom_call.1} parent=1 // pred_fallthru
      _
    // Predicated region
    $region18: #{tpu_custom_call.1} parent=1 // pred_check
      _
    $region19: #{tpu_custom_call.1} parent=1 // pred_check_branch
      %67 = sbr.rel (0) target = $region21
    $region20: #{tpu_custom_call.1} parent=1 // pred_region
      _
    $region21: #{tpu_custom_call.1} parent=1 // pred_fallthru
      _
    // Predicated region
    $region22: #{tpu_custom_call.1} parent=1 // pred_check
      _
    $region23: #{tpu_custom_call.1} parent=1 // pred_check_branch
      %69 = sbr.rel (0) target = $region25
    $region24: #{tpu_custom_call.1} parent=1 // pred_region
      %71 = vsyncadd [#allocation9], 0
      %s72 = sshll.u32 %s5, 4
      %s73 = int_to_ptr.hbm [resolvable:$true] %s72
      %s74 = sshll.u32 [#allocation10], 4
      %s75 = int_to_ptr.vmem [resolvable:$true] %s74
      %80 = dma.hbm_to_vmem [thread:$0]  %s73, 2048, %s75, [#allocation9], 128, 128, 8
    $region25: #{tpu_custom_call.1} parent=1 // pred_fallthru
      _
    // Predicated region
    $region26: #{tpu_custom_call.1} parent=1 // pred_check
      _
    $region27: #{tpu_custom_call.1} parent=1 // pred_check_branch
      %82 = sbr.rel (0) target = $region29
    $region28: #{tpu_custom_call.1} parent=1 // pred_region
      _
    $region29: #{tpu_custom_call.1} parent=1 // pred_fallthru
      _
    // Predicated region
    $region30: #{tpu_custom_call.1} parent=1 // pred_check
      _
    $region31: #{tpu_custom_call.1} parent=1 // pred_check_branch
      %84 = sbr.rel (0) target = $region33
    $region32: #{tpu_custom_call.1} parent=1 // pred_region
      %86 = dma.done [#allocation3], 256
    $region33: #{tpu_custom_call.1} parent=1 // pred_fallthru
      _
    // Predicated region
    $region34: #{tpu_custom_call.1} parent=1 // pred_check
      _
    $region35: #{tpu_custom_call.1} parent=1 // pred_check_branch
      %88 = sbr.rel (0) target = $region37
    $region36: #{tpu_custom_call.1} parent=1 // pred_region
      %90 = dma.done [#allocation6], 1024
    $region37: #{tpu_custom_call.1} parent=1 // pred_fallthru
      _
    // Predicated region
    $region38: #{tpu_custom_call.1} parent=1 // pred_check
      _
    $region39: #{tpu_custom_call.1} parent=1 // pred_check_branch
      %92 = sbr.rel (0) target = $region41
    $region40: #{tpu_custom_call.1} parent=1 // pred_region
      %94 = dma.done [#allocation6], 32
    $region41: #{tpu_custom_call.1} parent=1 // pred_fallthru
      _
    // Predicated region
    $region42: #{tpu_custom_call.1} parent=1 // pred_check
      _
    $region43: #{tpu_custom_call.1} parent=1 // pred_check_branch
      %96 = sbr.rel (0) target = $region45
    $region44: #{tpu_custom_call.1} parent=1 // pred_region
      %98 = dma.done [#allocation9], 4096
    $region45: #{tpu_custom_call.1} parent=1 // pred_fallthru
      _
    // Predicated region
    $region46: #{tpu_custom_call.1} parent=1 // pred_check
      _
    $region47: #{tpu_custom_call.1} parent=1 // pred_check_branch
      %100 = sbr.rel (0) target = $region49
    $region48: #{tpu_custom_call.1} parent=1 // pred_region
      %102 = dma.done [#allocation9], 2048
    $region49: #{tpu_custom_call.1} parent=1 // pred_fallthru
      _
    %v103 = vld [vmem:[#allocation2] sm:$0xff]
    %v104 = vld [vmem:[#allocation2 + $0x8] sm:$0xff]
    %v105 = vld [vmem:[#allocation5] sm:$0xff]
    %v106 = vld [vmem:[#allocation5 + $0x8] sm:$0xff]
    %v107 = vld [vmem:[#allocation5 + $0x10] sm:$0xff]
    %v108 = vld [vmem:[#allocation5 + $0x18] sm:$0xff]
    %v109 = vld [vmem:[#allocation5 + $0x20] sm:$0xff]
    %v110 = vld [vmem:[#allocation5 + $0x28] sm:$0xff]
    %v111 = vld [vmem:[#allocation5 + $0x30] sm:$0xff]
    %v112 = vld [vmem:[#allocation5 + $0x38] sm:$0xff]
    %v113 = vld [vmem:[#allocation7] sm:$0x3]
    %v115 = vperm.slane %v113, 0
    %v116 = vperm.slane %v113, 1
    %vm119 = vcmask 261120
    %v121 = vsel %vm119, %v103, 0
    %v124 = vsel %vm119, %v104, 0
    %126 = vmatpush.msra.mxu0 0.0
    %127 = vmatpush.msra.mxu0 0.0
    %128 = vmatpush.msra.mxu0 0.0
    %129 = vmatpush.msra.mxu0 0.0
    %130 = vmatpush.msra.mxu0 0.0
    %131 = vmatpush.msra.mxu0 0.0
    %132 = vmatpush.msra.mxu0 0.0
    %133 = vmatpush.msra.mxu0 0.0
    %134 = vmatpush.msra.mxu0 0.0
    %135 = vmatpush.msra.mxu0 0.0
    %136 = vmatpush.msra.mxu0 0.0
    %137 = vmatpush.msra.mxu0 0.0
    %138 = vmatpush.msra.mxu0 %v111
    %139 = vmatpush.msra.mxu0 %v109
    %140 = vmatpush.msra.mxu0 %v107
    %141 = vmatpush.msra.mxu0 %v105
    %142 = vmatmul.f32.gmra.mxu0 %v121
    %v143 = vpop.f32.mrf.mxu0
    %v144 = vadd.f32 %v115, %v143
    %145 = vmatmul.f32.gmra.mxu0 %v124
    %v146 = vpop.f32.mrf.mxu0
    %v147 = vadd.f32 %v115, %v146
    %148 = vdwg.mxu0
    %149 = vmatpush.msra.mxu0 0.0
    %150 = vmatpush.msra.mxu0 0.0
    %151 = vmatpush.msra.mxu0 0.0
    %152 = vmatpush.msra.mxu0 0.0
    %153 = vmatpush.msra.mxu0 0.0
    %154 = vmatpush.msra.mxu0 0.0
    %155 = vmatpush.msra.mxu0 0.0
    %156 = vmatpush.msra.mxu0 0.0
    %157 = vmatpush.msra.mxu0 0.0
    %158 = vmatpush.msra.mxu0 0.0
    %159 = vmatpush.msra.mxu0 0.0
    %160 = vmatpush.msra.mxu0 0.0
    %161 = vmatpush.msra.mxu0 %v112
    %162 = vmatpush.msra.mxu0 %v110
    %163 = vmatpush.msra.mxu0 %v108
    %164 = vmatpush.msra.mxu0 %v106
    %165 = vmatmul.f32.gmra.mxu0 %v121
    %v166 = vpop.f32.mrf.mxu0
    %v167 = vadd.f32 %v116, %v166
    %168 = vmatmul.f32.gmra.mxu0 %v124
    %v169 = vpop.f32.mrf.mxu0
    %v170 = vadd.f32 %v116, %v169
    %171 = vdwg.mxu0
    %v172 = vmul.f32 %v144, 0.25
    %v173 = vmul.f32 %v167, 0.25
    %v174 = vmul.f32 %v147, 0.25
    %v175 = vmul.f32 %v170, 0.25
    %v176 = vadd.f32 %v172, 0.5
    %v177 = vadd.f32 %v173, 0.5
    %v178 = vadd.f32 %v174, 0.5
    %v179 = vadd.f32 %v175, 0.5
    %v180 = vmul.f32 %v144, %v176
    %v181 = vmul.f32 %v167, %v177
    %v182 = vmul.f32 %v147, %v178
    %v183 = vmul.f32 %v170, %v179
    %v184 = vld [vmem:[#allocation8] sm:$0xff]
    %v185 = vld [vmem:[#allocation8 + $0x8] sm:$0xff]
    %v186 = vld [vmem:[#allocation8 + $0x10] sm:$0xff]
    %v187 = vld [vmem:[#allocation8 + $0x18] sm:$0xff]
    %v188 = vld [vmem:[#allocation8 + $0x20] sm:$0xff]
    %v189 = vld [vmem:[#allocation8 + $0x28] sm:$0xff]
    %v190 = vld [vmem:[#allocation8 + $0x30] sm:$0xff]
    %v191 = vld [vmem:[#allocation8 + $0x38] sm:$0xff]
    %v192 = vld [vmem:[#allocation8 + $0x40] sm:$0xff]
    %v193 = vld [vmem:[#allocation8 + $0x48] sm:$0xff]
    %v194 = vld [vmem:[#allocation8 + $0x50] sm:$0xff]
    %v195 = vld [vmem:[#allocation8 + $0x58] sm:$0xff]
    %v196 = vld [vmem:[#allocation8 + $0x60] sm:$0xff]
    %v197 = vld [vmem:[#allocation8 + $0x68] sm:$0xff]
    %v198 = vld [vmem:[#allocation8 + $0x70] sm:$0xff]
    %v199 = vld [vmem:[#allocation8 + $0x78] sm:$0xff]
    %v200 = vld [vmem:[#allocation8 + $0x80] sm:$0xff]
    %v201 = vld [vmem:[#allocation8 + $0x88] sm:$0xff]
    %v202 = vld [vmem:[#allocation8 + $0x90] sm:$0xff]
    %v203 = vld [vmem:[#allocation8 + $0x98] sm:$0xff]
    %v204 = vld [vmem:[#allocation8 + $0xa0] sm:$0xff]
    %v205 = vld [vmem:[#allocation8 + $0xa8] sm:$0xff]
    %v206 = vld [vmem:[#allocation8 + $0xb0] sm:$0xff]
    %v207 = vld [vmem:[#allocation8 + $0xb8] sm:$0xff]
    %v208 = vld [vmem:[#allocation8 + $0xc0] sm:$0xff]
    %v209 = vld [vmem:[#allocation8 + $0xc8] sm:$0xff]
    %v210 = vld [vmem:[#allocation8 + $0xd0] sm:$0xff]
    %v211 = vld [vmem:[#allocation8 + $0xd8] sm:$0xff]
    %v212 = vld [vmem:[#allocation8 + $0xe0] sm:$0xff]
    %v213 = vld [vmem:[#allocation8 + $0xe8] sm:$0xff]
    %v214 = vld [vmem:[#allocation8 + $0xf0] sm:$0xff]
    %v215 = vld [vmem:[#allocation8 + $0xf8] sm:$0xff]
    %v216 = vld [vmem:[%s4] sm:$0x1]
    %v218 = vperm.slane %v216, 0
    %220 = vmatpush.msra.mxu0 %v199
    %221 = vmatpush.msra.mxu0 %v198
    %222 = vmatpush.msra.mxu0 %v197
    %223 = vmatpush.msra.mxu0 %v196
    %224 = vmatpush.msra.mxu0 %v195
    %225 = vmatpush.msra.mxu0 %v194
    %226 = vmatpush.msra.mxu0 %v193
    %227 = vmatpush.msra.mxu0 %v192
    %228 = vmatpush.msra.mxu0 %v191
    %229 = vmatpush.msra.mxu0 %v190
    %230 = vmatpush.msra.mxu0 %v189
    %231 = vmatpush.msra.mxu0 %v188
    %232 = vmatpush.msra.mxu0 %v187
    %233 = vmatpush.msra.mxu0 %v186
    %234 = vmatpush.msra.mxu0 %v185
    %235 = vmatpush.msra.mxu0 %v184
    %236 = vmatmul.f32.gmra.mxu0 %v180
    %v237 = vpop.f32.mrf.mxu0
    %v238 = vadd.f32 %v218, %v237
    %239 = vmatmul.f32.gmra.mxu0 %v182
    %v240 = vpop.f32.mrf.mxu0
    %v241 = vadd.f32 %v218, %v240
    %242 = vdwg.mxu0
    %243 = vmatpush.msra.mxu0 %v215
    %244 = vmatpush.msra.mxu0 %v214
    %245 = vmatpush.msra.mxu0 %v213
    %246 = vmatpush.msra.mxu0 %v212
    %247 = vmatpush.msra.mxu0 %v211
    %248 = vmatpush.msra.mxu0 %v210
    %249 = vmatpush.msra.mxu0 %v209
    %250 = vmatpush.msra.mxu0 %v208
    %251 = vmatpush.msra.mxu0 %v207
    %252 = vmatpush.msra.mxu0 %v206
    %253 = vmatpush.msra.mxu0 %v205
    %254 = vmatpush.msra.mxu0 %v204
    %255 = vmatpush.msra.mxu0 %v203
    %256 = vmatpush.msra.mxu0 %v202
    %257 = vmatpush.msra.mxu0 %v201
    %258 = vmatpush.msra.mxu0 %v200
    %259 = vmatmul.f32.gmra.mxu0 %v181
    %v260 = vpop.f32.mrf.mxu0
    %v261 = vadd.f32 %v238, %v260
    %262 = vmatmul.f32.gmra.mxu0 %v183
    %v263 = vpop.f32.mrf.mxu0
    %v264 = vadd.f32 %v241, %v263
    %265 = vdwg.mxu0
    %v266 = vmul.f32 %v261, 0.25
    %v267 = vmul.f32 %v264, 0.25
    %v268 = vadd.f32 %v266, 0.5
    %v269 = vadd.f32 %v267, 0.5
    %v270 = vmul.f32 %v261, %v268
    %v271 = vmul.f32 %v264, %v269
    %v272 = vld [vmem:[#allocation10] sm:$0xff]
    %v273 = vld [vmem:[#allocation10 + $0x8] sm:$0xff]
    %v274 = vld [vmem:[#allocation10 + $0x10] sm:$0xff]
    %v275 = vld [vmem:[#allocation10 + $0x18] sm:$0xff]
    %v276 = vld [vmem:[#allocation10 + $0x20] sm:$0xff]
    %v277 = vld [vmem:[#allocation10 + $0x28] sm:$0xff]
    %v278 = vld [vmem:[#allocation10 + $0x30] sm:$0xff]
    %v279 = vld [vmem:[#allocation10 + $0x38] sm:$0xff]
    %v280 = vld [vmem:[#allocation10 + $0x40] sm:$0xff]
    %v281 = vld [vmem:[#allocation10 + $0x48] sm:$0xff]
    %v282 = vld [vmem:[#allocation10 + $0x50] sm:$0xff]
    %v283 = vld [vmem:[#allocation10 + $0x58] sm:$0xff]
    %v284 = vld [vmem:[#allocation10 + $0x60] sm:$0xff]
    %v285 = vld [vmem:[#allocation10 + $0x68] sm:$0xff]
    %v286 = vld [vmem:[#allocation10 + $0x70] sm:$0xff]
    %v287 = vld [vmem:[#allocation10 + $0x78] sm:$0xff]
    %v288 = vld [vmem:[%s6] sm:$0x1]
    %v290 = vperm.slane %v288, 0
    %292 = vmatpush.msra.mxu0 %v287
    %293 = vmatpush.msra.mxu0 %v286
    %294 = vmatpush.msra.mxu0 %v285
    %295 = vmatpush.msra.mxu0 %v284
    %296 = vmatpush.msra.mxu0 %v283
    %297 = vmatpush.msra.mxu0 %v282
    %298 = vmatpush.msra.mxu0 %v281
    %299 = vmatpush.msra.mxu0 %v280
    %300 = vmatpush.msra.mxu0 %v279
    %301 = vmatpush.msra.mxu0 %v278
    %302 = vmatpush.msra.mxu0 %v277
    %303 = vmatpush.msra.mxu0 %v276
    %304 = vmatpush.msra.mxu0 %v275
    %305 = vmatpush.msra.mxu0 %v274
    %306 = vmatpush.msra.mxu0 %v273
    %307 = vmatpush.msra.mxu0 %v272
    %308 = vmatmul.f32.gmra.mxu0 %v270
    %v309 = vpop.f32.mrf.mxu0
    %v310 = vadd.f32 %v290, %v309
    %311 = vmatmul.f32.gmra.mxu0 %v271
    %v312 = vpop.f32.mrf.mxu0
    %v313 = vadd.f32 %v290, %v312
    %314 = vdwg.mxu0
    %315 = vst [vmem:[#allocation11] sm:$0xff] %v310
    %316 = vst [vmem:[#allocation11 + $0x8] sm:$0xff] %v313
    // Predicated region
    $region50: #{tpu_custom_call.1} parent=1 // pred_check
      _
    $region51: #{tpu_custom_call.1} parent=1 // pred_check_branch
      %318 = sbr.rel (0) target = $region53
    $region52: #{tpu_custom_call.1} parent=1 // pred_region
      %320 = vsyncadd [#allocation4], 128
      %s321 = sshll.u32 [#allocation11], 4
      %s322 = int_to_ptr.vmem [resolvable:$true] %s321
      %s323 = sshll.u32 %s7, 4
      %s324 = int_to_ptr.hbm [resolvable:$true] %s323
      %329 = dma.vmem_to_hbm [thread:$0]  %s322, 128, %s324, [#allocation4], 128, 128, 8
    $region53: #{tpu_custom_call.1} parent=1 // pred_fallthru
      _
    // Predicated region
    $region54: #{tpu_custom_call.1} parent=1 // pred_check
      _
    $region55: #{tpu_custom_call.1} parent=1 // pred_check_branch
      %331 = sbr.rel (0) target = $region57
    $region56: #{tpu_custom_call.1} parent=1 // pred_region
      %333 = dma.done [#allocation4], 256
    $region57: #{tpu_custom_call.1} parent=1 // pred_fallthru
      _
    %334 = vsyncpa [#allocation3], 1
    %335 = vsyncpa [#allocation6], 1
    %336 = vsyncpa [#allocation9], 1
    %337 = vsyncpa [#allocation4], 1

// kernel: tpu_custom_call.1
$region0: #{tpu_custom_call.1}
  #allocation0 [shape = 'u32[]', space=smem, size = 0x4, offset = 0x4, fixed_abs, tag = 'smem constant byte address 0x4 - core index']
  #allocation1 [shape = 'u32[72,128]{1,0:T(1,128)}', space=vmem, size = 0x9000, scoped, tag = 'internal scratch']
  %s0 = inlined_call_operand.hbm [shape: f32[8,32], index: 0, kind: input, shape index: {}]
  %s1 = inlined_call_operand.hbm [shape: f32[32,256], index: 1, kind: input, shape index: {}]
  %s2 = inlined_call_operand.hbm [shape: f32[1,256], index: 2, kind: input, shape index: {}]
  %s3 = inlined_call_operand.hbm [shape: f32[256,128], index: 3, kind: input, shape index: {}]
  %s4 = inlined_call_operand.vmem [shape: f32[1,128], index: 4, kind: input, shape index: {}]
  %s5 = inlined_call_operand.hbm [shape: f32[128,128], index: 5, kind: input, shape index: {}]
  %s6 = inlined_call_operand.vmem [shape: f32[1,128], index: 6, kind: input, shape index: {}]
  %s7 = inlined_call_operand.hbm [shape: f32[8,128], index: 7, kind: output, shape index: {}]
  %s8 = sld [smem:[#allocation0]]
  $region58: #{tpu_custom_call.1} parent=0
    _
  %s10 = ssub.s32 1, %s8
  %s11 = scalar_select 0, %s10, %s8
  $region1: #{tpu_custom_call.1} parent=0
    #allocation2 [shape = 'u8[8192]{0}', space=vmem, size = 0x2000, scoped, tag = 'input window, operand 0, single buffered']
    #allocation3 [shape = 's32[1]{0}', space=sflag, size = 0x4, scoped, tag = 'scoped memory for tpu_custom_call.1']
    #allocation4 [shape = 's32[1]{0}', space=sflag, size = 0x4, scoped, tag = 'scoped memory for tpu_custom_call.1']
    #allocation5 [shape = 'u8[32768]{0}', space=vmem, size = 0x8000, scoped, tag = 'input window, operand 1, single buffered']
    #allocation6 [shape = 's32[1]{0}', space=sflag, size = 0x4, scoped, tag = 'scoped memory for tpu_custom_call.1']
    #allocation7 [shape = 'u8[1024]{0}', space=vmem, size = 0x400, scoped, tag = 'input window, operand 2, single buffered']
    #allocation8 [shape = 'u8[131072]{0}', space=vmem, size = 0x20000, scoped, tag = 'input window, operand 3, single buffered']
    #allocation9 [shape = 's32[1]{0}', space=sflag, size = 0x4, scoped, tag = 'scoped memory for tpu_custom_call.1']
    #allocation10 [shape = 'u8[65536]{0}', space=vmem, size = 0x10000, scoped, tag = 'input window, operand 5, single buffered']
    #allocation11 [shape = 'u8[8192]{0}', space=vmem, size = 0x2000, scoped, tag = 'output window, operand 0, single buffered']
    %12 = vsyncpa [#allocation3], 0
    %13 = vsyncpa [#allocation6], 0
    %14 = vsyncpa [#allocation9], 0
    %15 = vsyncpa [#allocation4], 0
    // Predicated region
    $region2: #{tpu_custom_call.1} parent=1 // pred_check
      _
    $region3: #{tpu_custom_call.1} parent=1 // pred_check_branch
      %17 = sbr.rel (0) target = $region5
    $region4: #{tpu_custom_call.1} parent=1 // pred_region
      %19 = vsyncadd [#allocation3], 128
      %s20 = sshll.u32 %s0, 4
      %s21 = int_to_ptr.hbm [resolvable:$true] %s20
      %s22 = sshll.u32 [#allocation2], 4
      %s23 = int_to_ptr.vmem [resolvable:$true] %s22
      %28 = dma.hbm_to_vmem [thread:$0]  %s21, 128, %s23, [#allocation3], 128, 128, 8
    $region5: #{tpu_custom_call.1} parent=1 // pred_fallthru
      _
    // Predicated region
    $region6: #{tpu_custom_call.1} parent=1 // pred_check
      _
    $region7: #{tpu_custom_call.1} parent=1 // pred_check_branch
      %30 = sbr.rel (0) target = $region9
    $region8: #{tpu_custom_call.1} parent=1 // pred_region
      %32 = vsyncadd [#allocation6], 0
      %s33 = sshll.u32 %s1, 4
      %s34 = int_to_ptr.hbm [resolvable:$true] %s33
      %s35 = sshll.u32 [#allocation5], 4
      %s36 = int_to_ptr.vmem [resolvable:$true] %s35
      %41 = dma.hbm_to_vmem [thread:$0]  %s34, 1024, %s36, [#allocation6], 256, 256, 16
    $region9: #{tpu_custom_call.1} parent=1 // pred_fallthru
      _
    // Predicated region
    $region10: #{tpu_custom_call.1} parent=1 // pred_check
      _
    $region11: #{tpu_custom_call.1} parent=1 // pred_check_branch
      %43 = sbr.rel (0) target = $region13
    $region12: #{tpu_custom_call.1} parent=1 // pred_region
      %45 = vsyncadd [#allocation6], 0
      %s47 = sshll.u32 %s2, 4
      %s48 = int_to_ptr.hbm [resolvable:$true] %s47
      %s49 = sshll.u32 [#allocation7], 4
      %s50 = int_to_ptr.vmem [resolvable:$true] %s49
      %52 = dma.hbm_to_vmem [thread:$0]  %s48, 32, %s50, [#allocation6]
    $region13: #{tpu_custom_call.1} parent=1 // pred_fallthru
      _
    // Predicated region
    $region14: #{tpu_custom_call.1} parent=1 // pred_check
      _
    $region15: #{tpu_custom_call.1} parent=1 // pred_check_branch
      %54 = sbr.rel (0) target = $region17
    $region16: #{tpu_custom_call.1} parent=1 // pred_region
      %56 = vsyncadd [#allocation9], 0
      %s57 = sshll.u32 %s3, 4
      %s58 = int_to_ptr.hbm [resolvable:$true] %s57
      %s59 = sshll.u32 [#allocation8], 4
      %s60 = int_to_ptr.vmem [resolvable:$true] %s59
      %65 = dma.hbm_to_vmem [thread:$0]  %s58, 4096, %s60, [#allocation9], 128, 128, 8
    $region17: #{tpu_custom_call.1} parent=1 // pred_fallthru
      _
    // Predicated region
    $region18: #{tpu_custom_call.1} parent=1 // pred_check
      _
    $region19: #{tpu_custom_call.1} parent=1 // pred_check_branch
      %67 = sbr.rel (0) target = $region21
    $region20: #{tpu_custom_call.1} parent=1 // pred_region
      _
    $region21: #{tpu_custom_call.1} parent=1 // pred_fallthru
      _
    // Predicated region
    $region22: #{tpu_custom_call.1} parent=1 // pred_check
      _
    $region23: #{tpu_custom_call.1} parent=1 // pred_check_branch
      %69 = sbr.rel (0) target = $region25
    $region24: #{tpu_custom_call.1} parent=1 // pred_region
      %71 = vsyncadd [#allocation9], 0
      %s72 = sshll.u32 %s5, 4
      %s73 = int_to_ptr.hbm [resolvable:$true] %s72
      %s74 = sshll.u32 [#allocation10], 4
      %s75 = int_to_ptr.vmem [resolvable:$true] %s74
      %80 = dma.hbm_to_vmem [thread:$0]  %s73, 2048, %s75, [#allocation9], 128, 128, 8
    $region25: #{tpu_custom_call.1} parent=1 // pred_fallthru
      _
    // Predicated region
    $region26: #{tpu_custom_call.1} parent=1 // pred_check
      _
    $region27: #{tpu_custom_call.1} parent=1 // pred_check_branch
      %82 = sbr.rel (0) target = $region29
    $region28: #{tpu_custom_call.1} parent=1 // pred_region
      _
    $region29: #{tpu_custom_call.1} parent=1 // pred_fallthru
      _
    // Predicated region
    $region30: #{tpu_custom_call.1} parent=1 // pred_check
      _
    $region31: #{tpu_custom_call.1} parent=1 // pred_check_branch
      %84 = sbr.rel (0) target = $region33
    $region32: #{tpu_custom_call.1} parent=1 // pred_region
      %86 = dma.done [#allocation3], 256
    $region33: #{tpu_custom_call.1} parent=1 // pred_fallthru
      _
    // Predicated region
    $region34: #{tpu_custom_call.1} parent=1 // pred_check
      _
    $region35: #{tpu_custom_call.1} parent=1 // pred_check_branch
      %88 = sbr.rel (0) target = $region37
    $region36: #{tpu_custom_call.1} parent=1 // pred_region
      %90 = dma.done [#allocation6], 1024
    $region37: #{tpu_custom_call.1} parent=1 // pred_fallthru
      _
    // Predicated region
    $region38: #{tpu_custom_call.1} parent=1 // pred_check
      _
    $region39: #{tpu_custom_call.1} parent=1 // pred_check_branch
      %92 = sbr.rel (0) target = $region41
    $region40: #{tpu_custom_call.1} parent=1 // pred_region
      %94 = dma.done [#allocation6], 32
    $region41: #{tpu_custom_call.1} parent=1 // pred_fallthru
      _
    // Predicated region
    $region42: #{tpu_custom_call.1} parent=1 // pred_check
      _
    $region43: #{tpu_custom_call.1} parent=1 // pred_check_branch
      %96 = sbr.rel (0) target = $region45
    $region44: #{tpu_custom_call.1} parent=1 // pred_region
      %98 = dma.done [#allocation9], 4096
    $region45: #{tpu_custom_call.1} parent=1 // pred_fallthru
      _
    // Predicated region
    $region46: #{tpu_custom_call.1} parent=1 // pred_check
      _
    $region47: #{tpu_custom_call.1} parent=1 // pred_check_branch
      %100 = sbr.rel (0) target = $region49
    $region48: #{tpu_custom_call.1} parent=1 // pred_region
      %102 = dma.done [#allocation9], 2048
    $region49: #{tpu_custom_call.1} parent=1 // pred_fallthru
      _
    %v103 = vld [vmem:[#allocation2] sm:$0xff]
    %v104 = vld [vmem:[#allocation2 + $0x8] sm:$0xff]
    %v105 = vld [vmem:[#allocation5] sm:$0xff]
    %v106 = vld [vmem:[#allocation5 + $0x8] sm:$0xff]
    %v107 = vld [vmem:[#allocation5 + $0x10] sm:$0xff]
    %v108 = vld [vmem:[#allocation5 + $0x18] sm:$0xff]
    %v109 = vld [vmem:[#allocation5 + $0x20] sm:$0xff]
    %v110 = vld [vmem:[#allocation5 + $0x28] sm:$0xff]
    %v111 = vld [vmem:[#allocation5 + $0x30] sm:$0xff]
    %v112 = vld [vmem:[#allocation5 + $0x38] sm:$0xff]
    %v113 = vld [vmem:[#allocation7] sm:$0x3]
    %v115 = vperm.slane %v113, 0
    %v116 = vperm.slane %v113, 1
    %vm119 = vcmask 261120
    %v121 = vsel %vm119, %v103, 0
    %v124 = vsel %vm119, %v104, 0
    %126 = vmatpush.msra.mxu0 0.0
    %127 = vmatpush.msra.mxu0 0.0
    %128 = vmatpush.msra.mxu0 0.0
    %129 = vmatpush.msra.mxu0 0.0
    %130 = vmatpush.msra.mxu0 0.0
    %131 = vmatpush.msra.mxu0 0.0
    %132 = vmatpush.msra.mxu0 0.0
    %133 = vmatpush.msra.mxu0 0.0
    %134 = vmatpush.msra.mxu0 0.0
    %135 = vmatpush.msra.mxu0 0.0
    %136 = vmatpush.msra.mxu0 0.0
    %137 = vmatpush.msra.mxu0 0.0
    %138 = vmatpush.msra.mxu0 %v111
    %139 = vmatpush.msra.mxu0 %v109
    %140 = vmatpush.msra.mxu0 %v107
    %141 = vmatpush.msra.mxu0 %v105
    %142 = vmatmul.f32.gmra.mxu0 %v121
    %v143 = vpop.f32.mrf.mxu0
    %v144 = vadd.f32 %v115, %v143
    %145 = vmatmul.f32.gmra.mxu0 %v124
    %v146 = vpop.f32.mrf.mxu0
    %v147 = vadd.f32 %v115, %v146
    %148 = vdwg.mxu0
    %149 = vmatpush.msra.mxu0 0.0
    %150 = vmatpush.msra.mxu0 0.0
    %151 = vmatpush.msra.mxu0 0.0
    %152 = vmatpush.msra.mxu0 0.0
    %153 = vmatpush.msra.mxu0 0.0
    %154 = vmatpush.msra.mxu0 0.0
    %155 = vmatpush.msra.mxu0 0.0
    %156 = vmatpush.msra.mxu0 0.0
    %157 = vmatpush.msra.mxu0 0.0
    %158 = vmatpush.msra.mxu0 0.0
    %159 = vmatpush.msra.mxu0 0.0
    %160 = vmatpush.msra.mxu0 0.0
    %161 = vmatpush.msra.mxu0 %v112
    %162 = vmatpush.msra.mxu0 %v110
    %163 = vmatpush.msra.mxu0 %v108
    %164 = vmatpush.msra.mxu0 %v106
    %165 = vmatmul.f32.gmra.mxu0 %v121
    %v166 = vpop.f32.mrf.mxu0
    %v167 = vadd.f32 %v116, %v166
    %168 = vmatmul.f32.gmra.mxu0 %v124
    %v169 = vpop.f32.mrf.mxu0
    %v170 = vadd.f32 %v116, %v169
    %171 = vdwg.mxu0
    %v172 = vmul.f32 %v144, 0.25
    %v173 = vmul.f32 %v167, 0.25
    %v174 = vmul.f32 %v147, 0.25
    %v175 = vmul.f32 %v170, 0.25
    %v176 = vadd.f32 %v172, 0.5
    %v177 = vadd.f32 %v173, 0.5
    %v178 = vadd.f32 %v174, 0.5
    %v179 = vadd.f32 %v175, 0.5
    %v180 = vmul.f32 %v144, %v176
    %v181 = vmul.f32 %v167, %v177
    %v182 = vmul.f32 %v147, %v178
    %v183 = vmul.f32 %v170, %v179
    %v184 = vld [vmem:[#allocation8] sm:$0xff]
    %v185 = vld [vmem:[#allocation8 + $0x8] sm:$0xff]
    %v186 = vld [vmem:[#allocation8 + $0x10] sm:$0xff]
    %v187 = vld [vmem:[#allocation8 + $0x18] sm:$0xff]
    %v188 = vld [vmem:[#allocation8 + $0x20] sm:$0xff]
    %v189 = vld [vmem:[#allocation8 + $0x28] sm:$0xff]
    %v190 = vld [vmem:[#allocation8 + $0x30] sm:$0xff]
    %v191 = vld [vmem:[#allocation8 + $0x38] sm:$0xff]
    %v192 = vld [vmem:[#allocation8 + $0x40] sm:$0xff]
    %v193 = vld [vmem:[#allocation8 + $0x48] sm:$0xff]
    %v194 = vld [vmem:[#allocation8 + $0x50] sm:$0xff]
    %v195 = vld [vmem:[#allocation8 + $0x58] sm:$0xff]
    %v196 = vld [vmem:[#allocation8 + $0x60] sm:$0xff]
    %v197 = vld [vmem:[#allocation8 + $0x68] sm:$0xff]
    %v198 = vld [vmem:[#allocation8 + $0x70] sm:$0xff]
    %v199 = vld [vmem:[#allocation8 + $0x78] sm:$0xff]
    %v200 = vld [vmem:[#allocation8 + $0x80] sm:$0xff]
    %v201 = vld [vmem:[#allocation8 + $0x88] sm:$0xff]
    %v202 = vld [vmem:[#allocation8 + $0x90] sm:$0xff]
    %v203 = vld [vmem:[#allocation8 + $0x98] sm:$0xff]
    %v204 = vld [vmem:[#allocation8 + $0xa0] sm:$0xff]
    %v205 = vld [vmem:[#allocation8 + $0xa8] sm:$0xff]
    %v206 = vld [vmem:[#allocation8 + $0xb0] sm:$0xff]
    %v207 = vld [vmem:[#allocation8 + $0xb8] sm:$0xff]
    %v208 = vld [vmem:[#allocation8 + $0xc0] sm:$0xff]
    %v209 = vld [vmem:[#allocation8 + $0xc8] sm:$0xff]
    %v210 = vld [vmem:[#allocation8 + $0xd0] sm:$0xff]
    %v211 = vld [vmem:[#allocation8 + $0xd8] sm:$0xff]
    %v212 = vld [vmem:[#allocation8 + $0xe0] sm:$0xff]
    %v213 = vld [vmem:[#allocation8 + $0xe8] sm:$0xff]
    %v214 = vld [vmem:[#allocation8 + $0xf0] sm:$0xff]
    %v215 = vld [vmem:[#allocation8 + $0xf8] sm:$0xff]
    %v216 = vld [vmem:[%s4] sm:$0x1]
    %v218 = vperm.slane %v216, 0
    %220 = vmatpush.msra.mxu0 %v199
    %221 = vmatpush.msra.mxu0 %v198
    %222 = vmatpush.msra.mxu0 %v197
    %223 = vmatpush.msra.mxu0 %v196
    %224 = vmatpush.msra.mxu0 %v195
    %225 = vmatpush.msra.mxu0 %v194
    %226 = vmatpush.msra.mxu0 %v193
    %227 = vmatpush.msra.mxu0 %v192
    %228 = vmatpush.msra.mxu0 %v191
    %229 = vmatpush.msra.mxu0 %v190
    %230 = vmatpush.msra.mxu0 %v189
    %231 = vmatpush.msra.mxu0 %v188
    %232 = vmatpush.msra.mxu0 %v187
    %233 = vmatpush.msra.mxu0 %v186
    %234 = vmatpush.msra.mxu0 %v185
    %235 = vmatpush.msra.mxu0 %v184
    %236 = vmatmul.f32.gmra.mxu0 %v180
    %v237 = vpop.f32.mrf.mxu0
    %v238 = vadd.f32 %v218, %v237
    %239 = vmatmul.f32.gmra.mxu0 %v182
    %v240 = vpop.f32.mrf.mxu0
    %v241 = vadd.f32 %v218, %v240
    %242 = vdwg.mxu0
    %243 = vmatpush.msra.mxu0 %v215
    %244 = vmatpush.msra.mxu0 %v214
    %245 = vmatpush.msra.mxu0 %v213
    %246 = vmatpush.msra.mxu0 %v212
    %247 = vmatpush.msra.mxu0 %v211
    %248 = vmatpush.msra.mxu0 %v210
    %249 = vmatpush.msra.mxu0 %v209
    %250 = vmatpush.msra.mxu0 %v208
    %251 = vmatpush.msra.mxu0 %v207
    %252 = vmatpush.msra.mxu0 %v206
    %253 = vmatpush.msra.mxu0 %v205
    %254 = vmatpush.msra.mxu0 %v204
    %255 = vmatpush.msra.mxu0 %v203
    %256 = vmatpush.msra.mxu0 %v202
    %257 = vmatpush.msra.mxu0 %v201
    %258 = vmatpush.msra.mxu0 %v200
    %259 = vmatmul.f32.gmra.mxu0 %v181
    %v260 = vpop.f32.mrf.mxu0
    %v261 = vadd.f32 %v238, %v260
    %262 = vmatmul.f32.gmra.mxu0 %v183
    %v263 = vpop.f32.mrf.mxu0
    %v264 = vadd.f32 %v241, %v263
    %265 = vdwg.mxu0
    %v266 = vmul.f32 %v261, 0.25
    %v267 = vmul.f32 %v264, 0.25
    %v268 = vadd.f32 %v266, 0.5
    %v269 = vadd.f32 %v267, 0.5
    %v270 = vmul.f32 %v261, %v268
    %v271 = vmul.f32 %v264, %v269
    %v272 = vld [vmem:[#allocation10] sm:$0xff]
    %v273 = vld [vmem:[#allocation10 + $0x8] sm:$0xff]
    %v274 = vld [vmem:[#allocation10 + $0x10] sm:$0xff]
    %v275 = vld [vmem:[#allocation10 + $0x18] sm:$0xff]
    %v276 = vld [vmem:[#allocation10 + $0x20] sm:$0xff]
    %v277 = vld [vmem:[#allocation10 + $0x28] sm:$0xff]
    %v278 = vld [vmem:[#allocation10 + $0x30] sm:$0xff]
    %v279 = vld [vmem:[#allocation10 + $0x38] sm:$0xff]
    %v280 = vld [vmem:[#allocation10 + $0x40] sm:$0xff]
    %v281 = vld [vmem:[#allocation10 + $0x48] sm:$0xff]
    %v282 = vld [vmem:[#allocation10 + $0x50] sm:$0xff]
    %v283 = vld [vmem:[#allocation10 + $0x58] sm:$0xff]
    %v284 = vld [vmem:[#allocation10 + $0x60] sm:$0xff]
    %v285 = vld [vmem:[#allocation10 + $0x68] sm:$0xff]
    %v286 = vld [vmem:[#allocation10 + $0x70] sm:$0xff]
    %v287 = vld [vmem:[#allocation10 + $0x78] sm:$0xff]
    %v288 = vld [vmem:[%s6] sm:$0x1]
    %v290 = vperm.slane %v288, 0
    %292 = vmatpush.msra.mxu0 %v287
    %293 = vmatpush.msra.mxu0 %v286
    %294 = vmatpush.msra.mxu0 %v285
    %295 = vmatpush.msra.mxu0 %v284
    %296 = vmatpush.msra.mxu0 %v283
    %297 = vmatpush.msra.mxu0 %v282
    %298 = vmatpush.msra.mxu0 %v281
    %299 = vmatpush.msra.mxu0 %v280
    %300 = vmatpush.msra.mxu0 %v279
    %301 = vmatpush.msra.mxu0 %v278
    %302 = vmatpush.msra.mxu0 %v277
    %303 = vmatpush.msra.mxu0 %v276
    %304 = vmatpush.msra.mxu0 %v275
    %305 = vmatpush.msra.mxu0 %v274
    %306 = vmatpush.msra.mxu0 %v273
    %307 = vmatpush.msra.mxu0 %v272
    %308 = vmatmul.f32.gmra.mxu0 %v270
    %v309 = vpop.f32.mrf.mxu0
    %v310 = vadd.f32 %v290, %v309
    %311 = vmatmul.f32.gmra.mxu0 %v271
    %v312 = vpop.f32.mrf.mxu0
    %v313 = vadd.f32 %v290, %v312
    %314 = vdwg.mxu0
    %315 = vst [vmem:[#allocation11] sm:$0xff] %v310
    %316 = vst [vmem:[#allocation11 + $0x8] sm:$0xff] %v313
    // Predicated region
    $region50: #{tpu_custom_call.1} parent=1 // pred_check
      _
    $region51: #{tpu_custom_call.1} parent=1 // pred_check_branch
      %318 = sbr.rel (0) target = $region53
    $region52: #{tpu_custom_call.1} parent=1 // pred_region
      %320 = vsyncadd [#allocation4], 128
      %s321 = sshll.u32 [#allocation11], 4
      %s322 = int_to_ptr.vmem [resolvable:$true] %s321
      %s323 = sshll.u32 %s7, 4
      %s324 = int_to_ptr.hbm [resolvable:$true] %s323
      %329 = dma.vmem_to_hbm [thread:$0]  %s322, 128, %s324, [#allocation4], 128, 128, 8
    $region53: #{tpu_custom_call.1} parent=1 // pred_fallthru
      _
    // Predicated region
    $region54: #{tpu_custom_call.1} parent=1 // pred_check
      _
    $region55: #{tpu_custom_call.1} parent=1 // pred_check_branch
      %331 = sbr.rel (0) target = $region57
    $region56: #{tpu_custom_call.1} parent=1 // pred_region
      %333 = dma.done [#allocation4], 256
    $region57: #{tpu_custom_call.1} parent=1 // pred_fallthru
      _
    %334 = vsyncpa [#allocation3], 1
    %335 = vsyncpa [#allocation6], 1
    %336 = vsyncpa [#allocation9], 1
    %337 = vsyncpa [#allocation4], 1

</llo_original>
